<compile_context>
chip_gen: v7x
topology: tpu7x:2x2x1
jax: 0.10.0
libtpu: 0.0.40
codegen_flags: <defaults>
</compile_context>

<pallas_src>
import jax
import jax.numpy as jnp
from jax.experimental import pallas as pl
from jax.experimental.pallas import tpu as pltpu

IN_FEATURES = 100
OUT_FEATURES = 2

F_PAD = 128      # layer-0 input width  (100 -> 128)
H = 256          # hidden width for layers 0..3 outputs
OUT_PAD = 128    # layer-4 output width (2 -> 128), minimum lane-dense store
N_MID = 3        # layers 1..3 live in the (3, 256, 256) slab
BM_CAP = 512     # per-tile batch cap


# ---------------------------------------------------------------------------
# Pallas kernel: fused 5-layer MLP (Linear+ReLU x4, final Linear)
# ---------------------------------------------------------------------------
def _mlp_kernel(x_ref, w0_ref, wmid_ref, wlast_ref, b_ref, out_ref):
    # x_ref    : (BM, 128)     bf16  activations (batch on sublanes)
    # w0_ref   : (128, 256)    bf16  layer-0 weight (rows 100.. zero)
    # wmid_ref : (3, 256, 256) bf16  layers 1..3 (layer-3 cols 128.. zero)
    # wlast_ref: (256, 128)    bf16  layer-4 weight (rows 128.., cols 2.. zero)
    # b_ref    : (8, 256)      f32   biases, one row per layer (rows 5..7 unused)
    # out_ref  : (BM, 128)     f32   logits live in cols 0..1
    h = jnp.dot(x_ref[...], w0_ref[...], preferred_element_type=jnp.float32)
    h = jnp.maximum(h + b_ref[pl.ds(0, 1), :], 0.0)
    # TODO(synk): nn.Dropout2d(p=0.1) is identity at inference; no RNG applied.
    for layer in range(N_MID):
        y = jnp.dot(h.astype(jnp.bfloat16), wmid_ref[layer],
                    preferred_element_type=jnp.float32)
        h = jnp.maximum(y + b_ref[pl.ds(layer + 1, 1), :], 0.0)
    y = jnp.dot(h.astype(jnp.bfloat16), wlast_ref[...],
                preferred_element_type=jnp.float32)
    out_ref[...] = y + b_ref[pl.ds(4, 1), pl.ds(0, OUT_PAD)]


def _round_up(n, m):
    return ((n + m - 1) // m) * m


def _choose_bm(B):
    """Batch tile: sublane-aligned, minimal padding waste, capped at BM_CAP."""
    B8 = _round_up(max(B, 1), 8)
    if B8 <= BM_CAP:
        return B8
    n_tiles = -(-B8 // BM_CAP)                  # ceil(B8 / cap)
    return _round_up(-(-B8 // n_tiles), 8)      # round_up(ceil(B8 / n_tiles), 8)


# ---------------------------------------------------------------------------
# One-time parameter packing (hoisted out of the per-call path)
# ---------------------------------------------------------------------------
def prepare_params(params):
    """params: 5x (W:(fan_in,fan_out), b:(fan_out,)) -> packed bf16/f32 slabs."""
    (w0, b0), (w1, b1), (w2, b2), (w3, b3), (w4, b4) = params

    def pad2(w, rows, cols):
        r, c = w.shape
        return jnp.pad(w.astype(jnp.float32), ((0, rows - r), (0, cols - c)))

    def pad1(b, n):
        return jnp.pad(b.astype(jnp.float32), (0, n - b.shape[0]))

    w0_p = pad2(w0, F_PAD, H).astype(jnp.bfloat16)                 # (128, 256)
    w_mid = jnp.stack([pad2(w1, H, H), pad2(w2, H, H),
                       pad2(w3, H, H)]).astype(jnp.bfloat16)       # (3, 256, 256)
    w_last = pad2(w4, H, OUT_PAD).astype(jnp.bfloat16)             # (256, 128)

    bs = [pad1(b0, H), pad1(b1, H), pad1(b2, H), pad1(b3, H), pad1(b4, H)]
    bs += [jnp.zeros((H,), jnp.float32)] * (8 - len(bs))
    b_packed = jnp.stack(bs)                                       # (8, 256) f32
    return w0_p, w_mid, w_last, b_packed


# ---------------------------------------------------------------------------
# Fused forward: one pallas_call for the (concatenated) batch
# ---------------------------------------------------------------------------
@jax.jit
def _mlp_forward_padded(x, w0, w_mid, w_last, b_packed):
    """x: (B, 100) -> (B_pad, 128) f32 (caller slices [:B, :2])."""
    B, F = x.shape
    BM = _choose_bm(B)
    B_pad = _round_up(B, BM)
    grid = (B_pad // BM,)

    # bf16 activations at the kernel boundary: halves input DMA; the kernel
    # rounds to bf16 before every dot anyway, so this is numerically identical.
    x_p = jnp.pad(x.astype(jnp.float32),
                  ((0, B_pad - B), (0, F_PAD - F))).astype(jnp.bfloat16)

    flops = 2 * B_pad * (F_PAD * H + N_MID * H * H + H * OUT_PAD)
    bytes_accessed = (w0.size * 2 + w_mid.size * 2 + w_last.size * 2
                      + b_packed.size * 4 + x_p.size * 2 + B_pad * OUT_PAD * 4)

    return pl.pallas_call(
        _mlp_kernel,
        out_shape=jax.ShapeDtypeStruct((B_pad, OUT_PAD), jnp.float32),
        grid=grid,
        in_specs=[
            pl.BlockSpec((BM, F_PAD), lambda i: (i, 0)),          # activations
            pl.BlockSpec((F_PAD, H), lambda i: (0, 0)),           # W0 (resident)
            pl.BlockSpec((N_MID, H, H), lambda i: (0, 0, 0)),     # W1..W3 (resident)
            pl.BlockSpec((H, OUT_PAD), lambda i: (0, 0)),         # W4 (resident)
            pl.BlockSpec((8, H), lambda i: (0, 0)),               # biases (resident)
        ],
        out_specs=pl.BlockSpec((BM, OUT_PAD), lambda i: (i, 0)),
        compiler_params=pltpu.CompilerParams(
            dimension_semantics=("parallel",)),
        cost_estimate=pl.CostEstimate(flops=flops, transcendentals=0,
                                      bytes_accessed=bytes_accessed),
    )(x_p, w0, w_mid, w_last, b_packed)


def forward_once(x, packed_params):
    out = _mlp_forward_padded(x, *packed_params)
    return out[:x.shape[0], :OUT_FEATURES]


def siamese_forward(input1, input2, packed_params):
    """Matches SiameseNetwork.forward; both branches fused into one kernel."""
    b1, b2 = input1.shape[0], input2.shape[0]
    x = jnp.concatenate([input1, input2], axis=0)
    out = _mlp_forward_padded(x, *packed_params)
    return out[:b1, :OUT_FEATURES], out[b1:b1 + b2, :OUT_FEATURES]


# ---------------------------------------------------------------------------
# Deterministic parameter init (PyTorch nn.Linear default: U(-1/sqrt(fan_in), .))
# ---------------------------------------------------------------------------
def init_params(key):
    dims = [(IN_FEATURES, 256), (256, 256), (256, 256), (256, 128),
            (128, OUT_FEATURES)]
    params = []
    for (fan_in, fan_out) in dims:
        key, kw, kb = jax.random.split(key, 3)
        bound = 1.0 / jnp.sqrt(fan_in)
        w = jax.random.uniform(kw, (fan_in, fan_out), jnp.float32, -bound, bound)
        b = jax.random.uniform(kb, (fan_out,), jnp.float32, -bound, bound)
        params.append((w, b))
    return tuple(params)


# ---------------------------------------------------------------------------
if __name__ == "__main__":
    key = jax.random.PRNGKey(0)
    kp, k1, k2, k3, k4 = jax.random.split(key, 5)

    params = init_params(kp)
    packed = prepare_params(params)

    # Pure-JAX references.
    def ref_once(x, quantize):
        h = x
        for i, (w, b) in enumerate(params):
            if quantize:  # mimic the kernel's bf16-operand / f32-accum dots
                h = h.astype(jnp.bfloat16).astype(jnp.float32)
                w = w.astype(jnp.bfloat16).astype(jnp.float32)
            h = jnp.dot(h, w, preferred_element_type=jnp.float32) + b
            if i < len(params) - 1:
                h = jnp.maximum(h, 0.0)
        return h

    def check(i1, i2):
        o1, o2 = siamese_forward(i1, i2, packed)
        jax.block_until_ready((o1, o2))
        assert o1.shape == (i1.shape[0], OUT_FEATURES)
        assert o2.shape == (i2.shape[0], OUT_FEATURES)
        # Tight check vs. a reference using the same bf16 operand rounding.
        rq1, rq2 = ref_once(i1, True), ref_once(i2, True)
        assert jnp.allclose(o1, rq1, atol=1e-3, rtol=1e-3), "mismatch vs bf16 ref (1)"
        assert jnp.allclose(o2, rq2, atol=1e-3, rtol=1e-3), "mismatch vs bf16 ref (2)"
        # Loose semantic check vs. the full-f32 reference.
        rf1, rf2 = ref_once(i1, False), ref_once(i2, False)
        assert jnp.allclose(o1, rf1, atol=3e-2, rtol=3e-2), "mismatch vs f32 ref (1)"
        assert jnp.allclose(o2, rf2, atol=3e-2, rtol=3e-2), "mismatch vs f32 ref (2)"
        return o1, o2

    # Main small-shape case (batch=2 per branch, as in the module's typical use).
    input1 = jax.random.normal(k1, (2, IN_FEATURES), jnp.float32)
    input2 = jax.random.normal(k2, (2, IN_FEATURES), jnp.float32)
    check(input1, input2)

    # Unequal / non-aligned batch sizes to exercise padding & slicing.
    check(jax.random.normal(k3, (13, IN_FEATURES), jnp.float32),
          jax.random.normal(k4, (7, IN_FEATURES), jnp.float32))

    print("KERNEL_OK")
</pallas_src>

<mosaic_0001>
module attributes {stable_mosaic.version = 11 : i64} {
  func.func @_mlp_kernel(%arg0: i32, %arg1: memref<8x128xbf16, #tpu.memory_space<vmem>>, %arg2: memref<128x256xbf16, #tpu.memory_space<vmem>>, %arg3: memref<3x256x256xbf16, #tpu.memory_space<vmem>>, %arg4: memref<256x128xbf16, #tpu.memory_space<vmem>>, %arg5: memref<8x256xf32, #tpu.memory_space<vmem>>, %arg6: memref<8x128xf32, #tpu.memory_space<vmem>>) attributes {dimension_semantics = [#tpu.dimension_semantics<parallel>], iteration_bounds = array<i64: 1>, scalar_prefetch = 0 : i64, scratch_operands = 0 : i64, tpu.core_type = #tpu.core_type<tc>, window_params = [{transform_indices = @transform_0, window_bounds = array<i64: 8, 128>}, {pipeline_mode = #tpu.pipeline_mode<synchronous>, transform_indices = @transform_1, window_bounds = array<i64: 128, 256>}, {pipeline_mode = #tpu.pipeline_mode<synchronous>, transform_indices = @transform_2, window_bounds = array<i64: 3, 256, 256>}, {pipeline_mode = #tpu.pipeline_mode<synchronous>, transform_indices = @transform_3, window_bounds = array<i64: 256, 128>}, {pipeline_mode = #tpu.pipeline_mode<synchronous>, transform_indices = @transform_4, window_bounds = array<i64: 8, 256>}, {transform_indices = @transform_5, window_bounds = array<i64: 8, 128>}]} {
    %c0 = arith.constant 0 : index
    %c0_0 = arith.constant 0 : index
    %0 = vector.load %arg1[%c0, %c0_0] : memref<8x128xbf16, #tpu.memory_space<vmem>>, vector<8x128xbf16>
    %c0_1 = arith.constant 0 : index
    %c0_2 = arith.constant 0 : index
    %1 = vector.load %arg2[%c0_1, %c0_2] : memref<128x256xbf16, #tpu.memory_space<vmem>>, vector<128x256xbf16>
    %cst = arith.constant dense<0.000000e+00> : vector<8x256xf32>
    %2 = tpu.matmul %0, %1, %cst {dimension_numbers = #tpu.dot_dimension_numbers<[1], [0], [0], [1], [0, 0, 1, 1], [], []>} : vector<8x128xbf16>, vector<128x256xbf16>, vector<8x256xf32> -> vector<8x256xf32>
    %c0_3 = arith.constant 0 : index
    %c0_4 = arith.constant 0 : index
    %3 = vector.load %arg5[%c0_3, %c0_4] : memref<8x256xf32, #tpu.memory_space<vmem>>, vector<1x256xf32>
    %4 = vector.broadcast %3 : vector<1x256xf32> to vector<8x256xf32>
    %5 = arith.addf %2, %4 : vector<8x256xf32>
    %cst_5 = arith.constant 0.000000e+00 : f32
    %6 = vector.broadcast %cst_5 : f32 to vector<8x256xf32>
    %7 = arith.maximumf %5, %6 : vector<8x256xf32>
    %8 = arith.truncf %7 : vector<8x256xf32> to vector<8x256xbf16>
    %c0_6 = arith.constant 0 : index
    %c0_7 = arith.constant 0 : index
    %c0_8 = arith.constant 0 : index
    %9 = vector.load %arg3[%c0_6, %c0_7, %c0_8] : memref<3x256x256xbf16, #tpu.memory_space<vmem>>, vector<1x256x256xbf16>
    %10 = vector.shape_cast %9 : vector<1x256x256xbf16> to vector<256x256xbf16>
    %cst_9 = arith.constant dense<0.000000e+00> : vector<8x256xf32>
    %11 = tpu.matmul %8, %10, %cst_9 {dimension_numbers = #tpu.dot_dimension_numbers<[1], [0], [0], [1], [0, 0, 1, 1], [], []>} : vector<8x256xbf16>, vector<256x256xbf16>, vector<8x256xf32> -> vector<8x256xf32>
    %c1 = arith.constant 1 : index
    %c0_10 = arith.constant 0 : index
    %12 = vector.load %arg5[%c1, %c0_10] : memref<8x256xf32, #tpu.memory_space<vmem>>, vector<1x256xf32>
    %13 = vector.broadcast %12 : vector<1x256xf32> to vector<8x256xf32>
    %14 = arith.addf %11, %13 : vector<8x256xf32>
    %cst_11 = arith.constant 0.000000e+00 : f32
    %15 = vector.broadcast %cst_11 : f32 to vector<8x256xf32>
    %16 = arith.maximumf %14, %15 : vector<8x256xf32>
    %17 = arith.truncf %16 : vector<8x256xf32> to vector<8x256xbf16>
    %c1_12 = arith.constant 1 : index
    %c0_13 = arith.constant 0 : index
    %c0_14 = arith.constant 0 : index
    %18 = vector.load %arg3[%c1_12, %c0_13, %c0_14] : memref<3x256x256xbf16, #tpu.memory_space<vmem>>, vector<1x256x256xbf16>
    %19 = vector.shape_cast %18 : vector<1x256x256xbf16> to vector<256x256xbf16>
    %cst_15 = arith.constant dense<0.000000e+00> : vector<8x256xf32>
    %20 = tpu.matmul %17, %19, %cst_15 {dimension_numbers = #tpu.dot_dimension_numbers<[1], [0], [0], [1], [0, 0, 1, 1], [], []>} : vector<8x256xbf16>, vector<256x256xbf16>, vector<8x256xf32> -> vector<8x256xf32>
    %c2 = arith.constant 2 : index
    %c0_16 = arith.constant 0 : index
    %21 = vector.load %arg5[%c2, %c0_16] : memref<8x256xf32, #tpu.memory_space<vmem>>, vector<1x256xf32>
    %22 = vector.broadcast %21 : vector<1x256xf32> to vector<8x256xf32>
    %23 = arith.addf %20, %22 : vector<8x256xf32>
    %cst_17 = arith.constant 0.000000e+00 : f32
    %24 = vector.broadcast %cst_17 : f32 to vector<8x256xf32>
    %25 = arith.maximumf %23, %24 : vector<8x256xf32>
    %26 = arith.truncf %25 : vector<8x256xf32> to vector<8x256xbf16>
    %c2_18 = arith.constant 2 : index
    %c0_19 = arith.constant 0 : index
    %c0_20 = arith.constant 0 : index
    %27 = vector.load %arg3[%c2_18, %c0_19, %c0_20] : memref<3x256x256xbf16, #tpu.memory_space<vmem>>, vector<1x256x256xbf16>
    %28 = vector.shape_cast %27 : vector<1x256x256xbf16> to vector<256x256xbf16>
    %cst_21 = arith.constant dense<0.000000e+00> : vector<8x256xf32>
    %29 = tpu.matmul %26, %28, %cst_21 {dimension_numbers = #tpu.dot_dimension_numbers<[1], [0], [0], [1], [0, 0, 1, 1], [], []>} : vector<8x256xbf16>, vector<256x256xbf16>, vector<8x256xf32> -> vector<8x256xf32>
    %c3 = arith.constant 3 : index
    %c0_22 = arith.constant 0 : index
    %30 = vector.load %arg5[%c3, %c0_22] : memref<8x256xf32, #tpu.memory_space<vmem>>, vector<1x256xf32>
    %31 = vector.broadcast %30 : vector<1x256xf32> to vector<8x256xf32>
    %32 = arith.addf %29, %31 : vector<8x256xf32>
    %cst_23 = arith.constant 0.000000e+00 : f32
    %33 = vector.broadcast %cst_23 : f32 to vector<8x256xf32>
    %34 = arith.maximumf %32, %33 : vector<8x256xf32>
    %35 = arith.truncf %34 : vector<8x256xf32> to vector<8x256xbf16>
    %c0_24 = arith.constant 0 : index
    %c0_25 = arith.constant 0 : index
    %36 = vector.load %arg4[%c0_24, %c0_25] : memref<256x128xbf16, #tpu.memory_space<vmem>>, vector<256x128xbf16>
    %cst_26 = arith.constant dense<0.000000e+00> : vector<8x128xf32>
    %37 = tpu.matmul %35, %36, %cst_26 {dimension_numbers = #tpu.dot_dimension_numbers<[1], [0], [0], [1], [0, 0, 1, 1], [], []>} : vector<8x256xbf16>, vector<256x128xbf16>, vector<8x128xf32> -> vector<8x128xf32>
    %c4 = arith.constant 4 : index
    %c0_27 = arith.constant 0 : index
    %38 = vector.load %arg5[%c4, %c0_27] : memref<8x256xf32, #tpu.memory_space<vmem>>, vector<1x128xf32>
    %39 = vector.broadcast %38 : vector<1x128xf32> to vector<8x128xf32>
    %40 = arith.addf %37, %39 : vector<8x128xf32>
    %c0_28 = arith.constant 0 : index
    %c0_29 = arith.constant 0 : index
    %41 = vector.load %arg6[%c0_28, %c0_29] : memref<8x128xf32, #tpu.memory_space<vmem>>, vector<8x128xf32>
    tpu.vector_store %arg6[%c0_28, %c0_29], %40 {strides = array<i32>} : memref<8x128xf32, #tpu.memory_space<vmem>>, vector<8x128xf32>,
    return
  }
  func.func @transform_0(%arg0: i32) -> (i32, i32) {
    %c0_i32 = arith.constant 0 : i32
    %c0_i32_0 = arith.constant 0 : i32
    return %arg0, %c0_i32 : i32, i32
  }
  func.func @transform_1(%arg0: i32) -> (i32, i32) {
    %c0_i32 = arith.constant 0 : i32
    %c0_i32_0 = arith.constant 0 : i32
    %c0_i32_1 = arith.constant 0 : i32
    return %c0_i32, %c0_i32_0 : i32, i32
  }
  func.func @transform_2(%arg0: i32) -> (i32, i32, i32) {
    %c0_i32 = arith.constant 0 : i32
    %c0_i32_0 = arith.constant 0 : i32
    %c0_i32_1 = arith.constant 0 : i32
    %c0_i32_2 = arith.constant 0 : i32
    return %c0_i32, %c0_i32_0, %c0_i32_1 : i32, i32, i32
  }
  func.func @transform_3(%arg0: i32) -> (i32, i32) {
    %c0_i32 = arith.constant 0 : i32
    %c0_i32_0 = arith.constant 0 : i32
    %c0_i32_1 = arith.constant 0 : i32
    return %c0_i32, %c0_i32_0 : i32, i32
  }
  func.func @transform_4(%arg0: i32) -> (i32, i32) {
    %c0_i32 = arith.constant 0 : i32
    %c0_i32_0 = arith.constant 0 : i32
    %c0_i32_1 = arith.constant 0 : i32
    return %c0_i32, %c0_i32_0 : i32, i32
  }
  func.func @transform_5(%arg0: i32) -> (i32, i32) {
    %c0_i32 = arith.constant 0 : i32
    %c0_i32_0 = arith.constant 0 : i32
    return %arg0, %c0_i32 : i32, i32
  }
}

</mosaic_0001>

<llo_original>
// kernel: _mlp_forward_padded.1
$region0: #{_mlp_forward_padded.1}
  #allocation0 [shape = 'u32[]', space=smem, size = 0x4, offset = 0x4, fixed_abs, tag = 'smem constant byte address 0x4 - core index']
  #allocation1 [shape = 'u32[144,128]{1,0:T(1,128)}', space=vmem, size = 0x12000, scoped, tag = 'internal scratch']
  %s0 = inlined_call_operand.vmem [shape: bf16[8,128], index: 0, kind: input, shape index: {}]
  %s1 = inlined_call_operand.hbm [shape: bf16[128,256], index: 1, kind: input, shape index: {}]
  %s2 = inlined_call_operand.hbm [shape: bf16[3,256,256], index: 2, kind: input, shape index: {}]
  %s3 = inlined_call_operand.hbm [shape: bf16[256,128], index: 3, kind: input, shape index: {}]
  %s4 = inlined_call_operand.vmem [shape: f32[8,256], index: 4, kind: input, shape index: {}]
  %s5 = inlined_call_operand.hbm [shape: f32[8,128], index: 5, kind: output, shape index: {}]
  %s6 = sld [smem:[#allocation0]]
  $region42: #{_mlp_forward_padded.1} parent=0
    _
  %s8 = ssub.s32 1, %s6
  %s9 = scalar_select 0, %s8, %s6
  $region1: #{_mlp_forward_padded.1} parent=0
    #allocation2 [shape = 'u8[65536]{0}', space=vmem, size = 0x10000, scoped, tag = 'input window, operand 1, single buffered']
    #allocation3 [shape = 's32[1]{0}', space=sflag, size = 0x4, scoped, tag = 'scoped memory for _mlp_forward_padded.1']
    #allocation4 [shape = 's32[1]{0}', space=sflag, size = 0x4, scoped, tag = 'scoped memory for _mlp_forward_padded.1']
    #allocation5 [shape = 'u8[393216]{0}', space=vmem, size = 0x60000, scoped, tag = 'input window, operand 2, single buffered']
    #allocation6 [shape = 's32[1]{0}', space=sflag, size = 0x4, scoped, tag = 'scoped memory for _mlp_forward_padded.1']
    #allocation7 [shape = 'u8[65536]{0}', space=vmem, size = 0x10000, scoped, tag = 'input window, operand 3, single buffered']
    #allocation8 [shape = 'u8[4096]{0}', space=vmem, size = 0x1000, scoped, tag = 'output window, operand 0, single buffered']
    %10 = vsyncpa [#allocation3], 0
    %11 = vsyncpa [#allocation6], 0
    %12 = vsyncpa [#allocation4], 0
    // Predicated region
    $region2: #{_mlp_forward_padded.1} parent=1 // pred_check
      _
    $region3: #{_mlp_forward_padded.1} parent=1 // pred_check_branch
      %14 = sbr.rel (0) target = $region5
    $region4: #{_mlp_forward_padded.1} parent=1 // pred_region
      _
    $region5: #{_mlp_forward_padded.1} parent=1 // pred_fallthru
      _
    // Predicated region
    $region6: #{_mlp_forward_padded.1} parent=1 // pred_check
      _
    $region7: #{_mlp_forward_padded.1} parent=1 // pred_check_branch
      %16 = sbr.rel (0) target = $region9
    $region8: #{_mlp_forward_padded.1} parent=1 // pred_region
      %s18 = ssub.s32 2048, 2048
      %19 = vsyncadd [#allocation3], %s18
      %s20 = sshll.u32 [#allocation2], 4
      %s21 = int_to_ptr.vmem [resolvable:$true] %s20
      %26 = dma.hbm_to_vmem [thread:$0]  %s1, 2048, %s21, [#allocation3], 128, 128, 8
    $region9: #{_mlp_forward_padded.1} parent=1 // pred_fallthru
      _
    // Predicated region
    $region10: #{_mlp_forward_padded.1} parent=1 // pred_check
      _
    $region11: #{_mlp_forward_padded.1} parent=1 // pred_check_branch
      %28 = sbr.rel (0) target = $region13
    $region12: #{_mlp_forward_padded.1} parent=1 // pred_region
      %s30 = ssub.s32 12288, 12288
      %31 = vsyncadd [#allocation6], %s30
      %s32 = sshll.u32 [#allocation5], 4
      %s33 = int_to_ptr.vmem [resolvable:$true] %s32
      %38 = dma.hbm_to_vmem [thread:$0]  %s2, 12288, %s33, [#allocation6], 128, 128, 8
    $region13: #{_mlp_forward_padded.1} parent=1 // pred_fallthru
      _
    // Predicated region
    $region14: #{_mlp_forward_padded.1} parent=1 // pred_check
      _
    $region15: #{_mlp_forward_padded.1} parent=1 // pred_check_branch
      %40 = sbr.rel (0) target = $region17
    $region16: #{_mlp_forward_padded.1} parent=1 // pred_region
      %s42 = ssub.s32 2048, 2048
      %43 = vsyncadd [#allocation6], %s42
      %s44 = sshll.u32 [#allocation7], 4
      %s45 = int_to_ptr.vmem [resolvable:$true] %s44
      %50 = dma.hbm_to_vmem [thread:$0]  %s3, 2048, %s45, [#allocation6], 64, 64, 4
    $region17: #{_mlp_forward_padded.1} parent=1 // pred_fallthru
      _
    // Predicated region
    $region18: #{_mlp_forward_padded.1} parent=1 // pred_check
      _
    $region19: #{_mlp_forward_padded.1} parent=1 // pred_check_branch
      %52 = sbr.rel (0) target = $region21
    $region20: #{_mlp_forward_padded.1} parent=1 // pred_region
      _
    $region21: #{_mlp_forward_padded.1} parent=1 // pred_fallthru
      _
    // Predicated region
    $region22: #{_mlp_forward_padded.1} parent=1 // pred_check
      _
    $region23: #{_mlp_forward_padded.1} parent=1 // pred_check_branch
      %54 = sbr.rel (0) target = $region25
    $region24: #{_mlp_forward_padded.1} parent=1 // pred_region
      %55 = dma.done [#allocation3], 2048
    $region25: #{_mlp_forward_padded.1} parent=1 // pred_fallthru
      _
    // Predicated region
    $region26: #{_mlp_forward_padded.1} parent=1 // pred_check
      _
    $region27: #{_mlp_forward_padded.1} parent=1 // pred_check_branch
      %57 = sbr.rel (0) target = $region29
    $region28: #{_mlp_forward_padded.1} parent=1 // pred_region
      %58 = dma.done [#allocation6], 12288
    $region29: #{_mlp_forward_padded.1} parent=1 // pred_fallthru
      _
    // Predicated region
    $region30: #{_mlp_forward_padded.1} parent=1 // pred_check
      _
    $region31: #{_mlp_forward_padded.1} parent=1 // pred_check_branch
      %60 = sbr.rel (0) target = $region33
    $region32: #{_mlp_forward_padded.1} parent=1 // pred_region
      %61 = dma.done [#allocation6], 2048
    $region33: #{_mlp_forward_padded.1} parent=1 // pred_fallthru
      _
    %v63 = vld [vmem:[%s0] sm:$0xf]
    %v64 = vld [vmem:[#allocation2] sm:$0xff]
    %v65 = vld [vmem:[#allocation2 + $0x8] sm:$0xff]
    %v66 = vld [vmem:[#allocation2 + $0x10] sm:$0xff]
    %v67 = vld [vmem:[#allocation2 + $0x18] sm:$0xff]
    %v68 = vld [vmem:[#allocation2 + $0x20] sm:$0xff]
    %v69 = vld [vmem:[#allocation2 + $0x28] sm:$0xff]
    %v70 = vld [vmem:[#allocation2 + $0x30] sm:$0xff]
    %v71 = vld [vmem:[#allocation2 + $0x38] sm:$0xff]
    %v72 = vld [vmem:[#allocation2 + $0x40] sm:$0xff]
    %v73 = vld [vmem:[#allocation2 + $0x48] sm:$0xff]
    %v74 = vld [vmem:[#allocation2 + $0x50] sm:$0xff]
    %v75 = vld [vmem:[#allocation2 + $0x58] sm:$0xff]
    %v76 = vld [vmem:[#allocation2 + $0x60] sm:$0xff]
    %v77 = vld [vmem:[#allocation2 + $0x68] sm:$0xff]
    %v78 = vld [vmem:[#allocation2 + $0x70] sm:$0xff]
    %v79 = vld [vmem:[#allocation2 + $0x78] sm:$0xff]
    %v80 = vld [vmem:[%s4] ss:$8 sm:$0x3]
    %v82 = vlaneseq
    %v83 = vshrl.u32 %v82, 7
    %v84 = vsub.s32 0, %v83
    %v85 = vrot.slane %v80, %v84
    %v86 = vlaneseq
    %v87 = vshrl.u32 %v86, 7
    %v88 = vsub.s32 1, %v87
    %v89 = vrot.slane %v80, %v88
    %v108 = vunpack.c.l.b16 %v64
    %v109 = vunpack.c.h.b16 %v64
    %v110 = vunpack.c.l.b16 %v65
    %v111 = vunpack.c.h.b16 %v65
    %v112 = vunpack.c.l.b16 %v66
    %v113 = vunpack.c.h.b16 %v66
    %v114 = vunpack.c.l.b16 %v67
    %v115 = vunpack.c.h.b16 %v67
    %v116 = vunpack.c.l.b16 %v68
    %v117 = vunpack.c.h.b16 %v68
    %v118 = vunpack.c.l.b16 %v69
    %v119 = vunpack.c.h.b16 %v69
    %v120 = vunpack.c.l.b16 %v70
    %v121 = vunpack.c.h.b16 %v70
    %v122 = vunpack.c.l.b16 %v71
    %v123 = vunpack.c.h.b16 %v71
    %v124 = vunpack.c.l.b16 %v72
    %v125 = vunpack.c.h.b16 %v72
    %v126 = vunpack.c.l.b16 %v73
    %v127 = vunpack.c.h.b16 %v73
    %v128 = vunpack.c.l.b16 %v74
    %v129 = vunpack.c.h.b16 %v74
    %v130 = vunpack.c.l.b16 %v75
    %v131 = vunpack.c.h.b16 %v75
    %v132 = vunpack.c.l.b16 %v76
    %v133 = vunpack.c.h.b16 %v76
    %v134 = vunpack.c.l.b16 %v77
    %v135 = vunpack.c.h.b16 %v77
    %v136 = vunpack.c.l.b16 %v78
    %v137 = vunpack.c.h.b16 %v78
    %v138 = vunpack.c.l.b16 %v79
    %v139 = vunpack.c.h.b16 %v79
    %v140 = vpack.c.b16 %v110, %v108
    %v141 = vpack.c.b16 %v111, %v109
    %v142 = vpack.c.b16 %v114, %v112
    %v143 = vpack.c.b16 %v115, %v113
    %v144 = vpack.c.b16 %v118, %v116
    %v145 = vpack.c.b16 %v119, %v117
    %v146 = vpack.c.b16 %v122, %v120
    %v147 = vpack.c.b16 %v123, %v121
    %v148 = vpack.c.b16 %v126, %v124
    %v149 = vpack.c.b16 %v127, %v125
    %v150 = vpack.c.b16 %v130, %v128
    %v151 = vpack.c.b16 %v131, %v129
    %v152 = vpack.c.b16 %v134, %v132
    %v153 = vpack.c.b16 %v135, %v133
    %v154 = vpack.c.b16 %v138, %v136
    %v155 = vpack.c.b16 %v139, %v137
    %172 = vmatprep.subr.bf16.mxu0 %v141
    %173 = vmatpush1.bf16.msra.mxu0 %v140
    %174 = vmatprep.subr.bf16.mxu0 %v143
    %175 = vmatpush1.bf16.msra.mxu0 %v142
    %176 = vmatprep.subr.bf16.mxu0 %v145
    %177 = vmatpush1.bf16.msra.mxu0 %v144
    %178 = vmatprep.subr.bf16.mxu0 %v147
    %179 = vmatpush1.bf16.msra.mxu0 %v146
    %180 = vmatprep.subr.bf16.mxu0 %v149
    %181 = vmatpush1.bf16.msra.mxu0 %v148
    %182 = vmatprep.subr.bf16.mxu0 %v151
    %183 = vmatpush1.bf16.msra.mxu0 %v150
    %184 = vmatprep.subr.bf16.mxu0 %v153
    %185 = vmatpush1.bf16.msra.mxu0 %v152
    %186 = vmatprep.subr.bf16.mxu0 %v155
    %187 = vmatpush1.bf16.msra.mxu0 %v154
    %188 = vmatprep.subr.bf16.mxu0 0
    %189 = vmatpush1.bf16.msra.mxu0 0
    %190 = vmatprep.subr.bf16.mxu0 0
    %191 = vmatpush1.bf16.msra.mxu0 0
    %192 = vmatprep.subr.bf16.mxu0 0
    %193 = vmatpush1.bf16.msra.mxu0 0
    %194 = vmatprep.subr.bf16.mxu0 0
    %195 = vmatpush1.bf16.msra.mxu0 0
    %196 = vmatprep.subr.bf16.mxu0 0
    %197 = vmatpush1.bf16.msra.mxu0 0
    %198 = vmatprep.subr.bf16.mxu0 0
    %199 = vmatpush1.bf16.msra.mxu0 0
    %200 = vmatprep.subr.bf16.mxu0 0
    %201 = vmatpush1.bf16.msra.mxu0 0
    %202 = vmatprep.subr.bf16.mxu0 0
    %203 = vmatpush1.bf16.msra.mxu0 0
    %204 = vmatprep.mubr.bf16.mxu0 0
    %205 = vmatmul.mubr.bf16.gmra.mrb[0].mxu0 %v63
    %v206 = vpop.f32.mrb[0].mxu0
    %v207 = vadd.f32 %v85, %v206
    %v208 = vpop.f32.mrb[0].mxu0
    %v209 = vadd.f32 %v89, %v208
    %v210 = vpop.f32.mrb[0].mxu0
    %v211 = vpop.f32.mrb[0].mxu0
    %212 = vdwg.mxu0
    %v213 = vmax.f32 %v207, 0.0
    %v214 = vmax.f32 %v209, 0.0
    %v215 = vpack.c.bf16 %v213, %v213
    %v216 = vpack.c.bf16 %v214, %v214
    %v217 = vld [vmem:[#allocation5] sm:$0xff]
    %v218 = vld [vmem:[#allocation5 + $0x8] sm:$0xff]
    %v219 = vld [vmem:[#allocation5 + $0x10] sm:$0xff]
    %v220 = vld [vmem:[#allocation5 + $0x18] sm:$0xff]
    %v221 = vld [vmem:[#allocation5 + $0x20] sm:$0xff]
    %v222 = vld [vmem:[#allocation5 + $0x28] sm:$0xff]
    %v223 = vld [vmem:[#allocation5 + $0x30] sm:$0xff]
    %v224 = vld [vmem:[#allocation5 + $0x38] sm:$0xff]
    %v225 = vld [vmem:[#allocation5 + $0x40] sm:$0xff]
    %v226 = vld [vmem:[#allocation5 + $0x48] sm:$0xff]
    %v227 = vld [vmem:[#allocation5 + $0x50] sm:$0xff]
    %v228 = vld [vmem:[#allocation5 + $0x58] sm:$0xff]
    %v229 = vld [vmem:[#allocation5 + $0x60] sm:$0xff]
    %v230 = vld [vmem:[#allocation5 + $0x68] sm:$0xff]
    %v231 = vld [vmem:[#allocation5 + $0x70] sm:$0xff]
    %v232 = vld [vmem:[#allocation5 + $0x78] sm:$0xff]
    %v233 = vld [vmem:[#allocation5 + $0x80] sm:$0xff]
    %v234 = vld [vmem:[#allocation5 + $0x88] sm:$0xff]
    %v235 = vld [vmem:[#allocation5 + $0x90] sm:$0xff]
    %v236 = vld [vmem:[#allocation5 + $0x98] sm:$0xff]
    %v237 = vld [vmem:[#allocation5 + $0xa0] sm:$0xff]
    %v238 = vld [vmem:[#allocation5 + $0xa8] sm:$0xff]
    %v239 = vld [vmem:[#allocation5 + $0xb0] sm:$0xff]
    %v240 = vld [vmem:[#allocation5 + $0xb8] sm:$0xff]
    %v241 = vld [vmem:[#allocation5 + $0xc0] sm:$0xff]
    %v242 = vld [vmem:[#allocation5 + $0xc8] sm:$0xff]
    %v243 = vld [vmem:[#allocation5 + $0xd0] sm:$0xff]
    %v244 = vld [vmem:[#allocation5 + $0xd8] sm:$0xff]
    %v245 = vld [vmem:[#allocation5 + $0xe0] sm:$0xff]
    %v246 = vld [vmem:[#allocation5 + $0xe8] sm:$0xff]
    %v247 = vld [vmem:[#allocation5 + $0xf0] sm:$0xff]
    %v248 = vld [vmem:[#allocation5 + $0xf8] sm:$0xff]
    %s249 = scalar_lea.vmem %s4, 1
    %v250 = vld [vmem:[%s249] ss:$8 sm:$0x3]
    %v252 = vlaneseq
    %v253 = vshrl.u32 %v252, 7
    %v254 = vsub.s32 0, %v253
    %v255 = vrot.slane %v250, %v254
    %v256 = vlaneseq
    %v257 = vshrl.u32 %v256, 7
    %v258 = vsub.s32 1, %v257
    %v259 = vrot.slane %v250, %v258
    %v294 = vunpack.c.l.b16 %v217
    %v295 = vunpack.c.h.b16 %v217
    %v296 = vunpack.c.l.b16 %v218
    %v297 = vunpack.c.h.b16 %v218
    %v298 = vunpack.c.l.b16 %v219
    %v299 = vunpack.c.h.b16 %v219
    %v300 = vunpack.c.l.b16 %v220
    %v301 = vunpack.c.h.b16 %v220
    %v302 = vunpack.c.l.b16 %v221
    %v303 = vunpack.c.h.b16 %v221
    %v304 = vunpack.c.l.b16 %v222
    %v305 = vunpack.c.h.b16 %v222
    %v306 = vunpack.c.l.b16 %v223
    %v307 = vunpack.c.h.b16 %v223
    %v308 = vunpack.c.l.b16 %v224
    %v309 = vunpack.c.h.b16 %v224
    %v310 = vunpack.c.l.b16 %v225
    %v311 = vunpack.c.h.b16 %v225
    %v312 = vunpack.c.l.b16 %v226
    %v313 = vunpack.c.h.b16 %v226
    %v314 = vunpack.c.l.b16 %v227
    %v315 = vunpack.c.h.b16 %v227
    %v316 = vunpack.c.l.b16 %v228
    %v317 = vunpack.c.h.b16 %v228
    %v318 = vunpack.c.l.b16 %v229
    %v319 = vunpack.c.h.b16 %v229
    %v320 = vunpack.c.l.b16 %v230
    %v321 = vunpack.c.h.b16 %v230
    %v322 = vunpack.c.l.b16 %v231
    %v323 = vunpack.c.h.b16 %v231
    %v324 = vunpack.c.l.b16 %v232
    %v325 = vunpack.c.h.b16 %v232
    %v326 = vunpack.c.l.b16 %v233
    %v327 = vunpack.c.h.b16 %v233
    %v328 = vunpack.c.l.b16 %v234
    %v329 = vunpack.c.h.b16 %v234
    %v330 = vunpack.c.l.b16 %v235
    %v331 = vunpack.c.h.b16 %v235
    %v332 = vunpack.c.l.b16 %v236
    %v333 = vunpack.c.h.b16 %v236
    %v334 = vunpack.c.l.b16 %v237
    %v335 = vunpack.c.h.b16 %v237
    %v336 = vunpack.c.l.b16 %v238
    %v337 = vunpack.c.h.b16 %v238
    %v338 = vunpack.c.l.b16 %v239
    %v339 = vunpack.c.h.b16 %v239
    %v340 = vunpack.c.l.b16 %v240
    %v341 = vunpack.c.h.b16 %v240
    %v342 = vunpack.c.l.b16 %v241
    %v343 = vunpack.c.h.b16 %v241
    %v344 = vunpack.c.l.b16 %v242
    %v345 = vunpack.c.h.b16 %v242
    %v346 = vunpack.c.l.b16 %v243
    %v347 = vunpack.c.h.b16 %v243
    %v348 = vunpack.c.l.b16 %v244
    %v349 = vunpack.c.h.b16 %v244
    %v350 = vunpack.c.l.b16 %v245
    %v351 = vunpack.c.h.b16 %v245
    %v352 = vunpack.c.l.b16 %v246
    %v353 = vunpack.c.h.b16 %v246
    %v354 = vunpack.c.l.b16 %v247
    %v355 = vunpack.c.h.b16 %v247
    %v356 = vunpack.c.l.b16 %v248
    %v357 = vunpack.c.h.b16 %v248
    %v358 = vpack.c.b16 %v296, %v294
    %v359 = vpack.c.b16 %v297, %v295
    %v360 = vpack.c.b16 %v300, %v298
    %v361 = vpack.c.b16 %v301, %v299
    %v362 = vpack.c.b16 %v304, %v302
    %v363 = vpack.c.b16 %v305, %v303
    %v364 = vpack.c.b16 %v308, %v306
    %v365 = vpack.c.b16 %v309, %v307
    %v366 = vpack.c.b16 %v312, %v310
    %v367 = vpack.c.b16 %v313, %v311
    %v368 = vpack.c.b16 %v316, %v314
    %v369 = vpack.c.b16 %v317, %v315
    %v370 = vpack.c.b16 %v320, %v318
    %v371 = vpack.c.b16 %v321, %v319
    %v372 = vpack.c.b16 %v324, %v322
    %v373 = vpack.c.b16 %v325, %v323
    %v374 = vpack.c.b16 %v328, %v326
    %v375 = vpack.c.b16 %v329, %v327
    %v376 = vpack.c.b16 %v332, %v330
    %v377 = vpack.c.b16 %v333, %v331
    %v378 = vpack.c.b16 %v336, %v334
    %v379 = vpack.c.b16 %v337, %v335
    %v380 = vpack.c.b16 %v340, %v338
    %v381 = vpack.c.b16 %v341, %v339
    %v382 = vpack.c.b16 %v344, %v342
    %v383 = vpack.c.b16 %v345, %v343
    %v384 = vpack.c.b16 %v348, %v346
    %v385 = vpack.c.b16 %v349, %v347
    %v386 = vpack.c.b16 %v352, %v350
    %v387 = vpack.c.b16 %v353, %v351
    %v388 = vpack.c.b16 %v356, %v354
    %v389 = vpack.c.b16 %v357, %v355
    %422 = vmatprep.subr.bf16.mxu0 %v359
    %423 = vmatpush1.bf16.msra.mxu0 %v358
    %424 = vmatprep.subr.bf16.mxu0 %v361
    %425 = vmatpush1.bf16.msra.mxu0 %v360
    %426 = vmatprep.subr.bf16.mxu0 %v363
    %427 = vmatpush1.bf16.msra.mxu0 %v362
    %428 = vmatprep.subr.bf16.mxu0 %v365
    %429 = vmatpush1.bf16.msra.mxu0 %v364
    %430 = vmatprep.subr.bf16.mxu0 %v367
    %431 = vmatpush1.bf16.msra.mxu0 %v366
    %432 = vmatprep.subr.bf16.mxu0 %v369
    %433 = vmatpush1.bf16.msra.mxu0 %v368
    %434 = vmatprep.subr.bf16.mxu0 %v371
    %435 = vmatpush1.bf16.msra.mxu0 %v370
    %436 = vmatprep.subr.bf16.mxu0 %v373
    %437 = vmatpush1.bf16.msra.mxu0 %v372
    %438 = vmatprep.subr.bf16.mxu0 %v375
    %439 = vmatpush1.bf16.msra.mxu0 %v374
    %440 = vmatprep.subr.bf16.mxu0 %v377
    %441 = vmatpush1.bf16.msra.mxu0 %v376
    %442 = vmatprep.subr.bf16.mxu0 %v379
    %443 = vmatpush1.bf16.msra.mxu0 %v378
    %444 = vmatprep.subr.bf16.mxu0 %v381
    %445 = vmatpush1.bf16.msra.mxu0 %v380
    %446 = vmatprep.subr.bf16.mxu0 %v383
    %447 = vmatpush1.bf16.msra.mxu0 %v382
    %448 = vmatprep.subr.bf16.mxu0 %v385
    %449 = vmatpush1.bf16.msra.mxu0 %v384
    %450 = vmatprep.subr.bf16.mxu0 %v387
    %451 = vmatpush1.bf16.msra.mxu0 %v386
    %452 = vmatprep.subr.bf16.mxu0 %v389
    %453 = vmatpush1.bf16.msra.mxu0 %v388
    %454 = vmatprep.mubr.bf16.mxu0 %v216
    %455 = vmatmul.mubr.bf16.gmra.mrb[0].mxu0 %v215
    %v456 = vpop.f32.mrb[0].mxu0
    %v457 = vadd.f32 %v255, %v456
    %v458 = vpop.f32.mrb[0].mxu0
    %v459 = vadd.f32 %v259, %v458
    %v460 = vpop.f32.mrb[0].mxu0
    %v461 = vpop.f32.mrb[0].mxu0
    %462 = vdwg.mxu0
    %v463 = vmax.f32 %v457, 0.0
    %v464 = vmax.f32 %v459, 0.0
    %v465 = vpack.c.bf16 %v463, %v463
    %v466 = vpack.c.bf16 %v464, %v464
    %s467 = scalar_lea.vmem [#allocation5], 256
    %v468 = vld [vmem:[%s467] sm:$0xff]
    %v469 = vld [vmem:[%s467 + $0x8] sm:$0xff]
    %v470 = vld [vmem:[%s467 + $0x10] sm:$0xff]
    %v471 = vld [vmem:[%s467 + $0x18] sm:$0xff]
    %v472 = vld [vmem:[%s467 + $0x20] sm:$0xff]
    %v473 = vld [vmem:[%s467 + $0x28] sm:$0xff]
    %v474 = vld [vmem:[%s467 + $0x30] sm:$0xff]
    %v475 = vld [vmem:[%s467 + $0x38] sm:$0xff]
    %v476 = vld [vmem:[%s467 + $0x40] sm:$0xff]
    %v477 = vld [vmem:[%s467 + $0x48] sm:$0xff]
    %v478 = vld [vmem:[%s467 + $0x50] sm:$0xff]
    %v479 = vld [vmem:[%s467 + $0x58] sm:$0xff]
    %v480 = vld [vmem:[%s467 + $0x60] sm:$0xff]
    %v481 = vld [vmem:[%s467 + $0x68] sm:$0xff]
    %v482 = vld [vmem:[%s467 + $0x70] sm:$0xff]
    %v483 = vld [vmem:[%s467 + $0x78] sm:$0xff]
    %v484 = vld [vmem:[%s467 + $0x80] sm:$0xff]
    %v485 = vld [vmem:[%s467 + $0x88] sm:$0xff]
    %v486 = vld [vmem:[%s467 + $0x90] sm:$0xff]
    %v487 = vld [vmem:[%s467 + $0x98] sm:$0xff]
    %v488 = vld [vmem:[%s467 + $0xa0] sm:$0xff]
    %v489 = vld [vmem:[%s467 + $0xa8] sm:$0xff]
    %v490 = vld [vmem:[%s467 + $0xb0] sm:$0xff]
    %v491 = vld [vmem:[%s467 + $0xb8] sm:$0xff]
    %v492 = vld [vmem:[%s467 + $0xc0] sm:$0xff]
    %v493 = vld [vmem:[%s467 + $0xc8] sm:$0xff]
    %v494 = vld [vmem:[%s467 + $0xd0] sm:$0xff]
    %v495 = vld [vmem:[%s467 + $0xd8] sm:$0xff]
    %v496 = vld [vmem:[%s467 + $0xe0] sm:$0xff]
    %v497 = vld [vmem:[%s467 + $0xe8] sm:$0xff]
    %v498 = vld [vmem:[%s467 + $0xf0] sm:$0xff]
    %v499 = vld [vmem:[%s467 + $0xf8] sm:$0xff]
    %s500 = scalar_lea.vmem %s4, 2
    %v501 = vld [vmem:[%s500] ss:$8 sm:$0x3]
    %v503 = vlaneseq
    %v504 = vshrl.u32 %v503, 7
    %v505 = vsub.s32 0, %v504
    %v506 = vrot.slane %v501, %v505
    %v507 = vlaneseq
    %v508 = vshrl.u32 %v507, 7
    %v509 = vsub.s32 1, %v508
    %v510 = vrot.slane %v501, %v509
    %v545 = vunpack.c.l.b16 %v468
    %v546 = vunpack.c.h.b16 %v468
    %v547 = vunpack.c.l.b16 %v469
    %v548 = vunpack.c.h.b16 %v469
    %v549 = vunpack.c.l.b16 %v470
    %v550 = vunpack.c.h.b16 %v470
    %v551 = vunpack.c.l.b16 %v471
    %v552 = vunpack.c.h.b16 %v471
    %v553 = vunpack.c.l.b16 %v472
    %v554 = vunpack.c.h.b16 %v472
    %v555 = vunpack.c.l.b16 %v473
    %v556 = vunpack.c.h.b16 %v473
    %v557 = vunpack.c.l.b16 %v474
    %v558 = vunpack.c.h.b16 %v474
    %v559 = vunpack.c.l.b16 %v475
    %v560 = vunpack.c.h.b16 %v475
    %v561 = vunpack.c.l.b16 %v476
    %v562 = vunpack.c.h.b16 %v476
    %v563 = vunpack.c.l.b16 %v477
    %v564 = vunpack.c.h.b16 %v477
    %v565 = vunpack.c.l.b16 %v478
    %v566 = vunpack.c.h.b16 %v478
    %v567 = vunpack.c.l.b16 %v479
    %v568 = vunpack.c.h.b16 %v479
    %v569 = vunpack.c.l.b16 %v480
    %v570 = vunpack.c.h.b16 %v480
    %v571 = vunpack.c.l.b16 %v481
    %v572 = vunpack.c.h.b16 %v481
    %v573 = vunpack.c.l.b16 %v482
    %v574 = vunpack.c.h.b16 %v482
    %v575 = vunpack.c.l.b16 %v483
    %v576 = vunpack.c.h.b16 %v483
    %v577 = vunpack.c.l.b16 %v484
    %v578 = vunpack.c.h.b16 %v484
    %v579 = vunpack.c.l.b16 %v485
    %v580 = vunpack.c.h.b16 %v485
    %v581 = vunpack.c.l.b16 %v486
    %v582 = vunpack.c.h.b16 %v486
    %v583 = vunpack.c.l.b16 %v487
    %v584 = vunpack.c.h.b16 %v487
    %v585 = vunpack.c.l.b16 %v488
    %v586 = vunpack.c.h.b16 %v488
    %v587 = vunpack.c.l.b16 %v489
    %v588 = vunpack.c.h.b16 %v489
    %v589 = vunpack.c.l.b16 %v490
    %v590 = vunpack.c.h.b16 %v490
    %v591 = vunpack.c.l.b16 %v491
    %v592 = vunpack.c.h.b16 %v491
    %v593 = vunpack.c.l.b16 %v492
    %v594 = vunpack.c.h.b16 %v492
    %v595 = vunpack.c.l.b16 %v493
    %v596 = vunpack.c.h.b16 %v493
    %v597 = vunpack.c.l.b16 %v494
    %v598 = vunpack.c.h.b16 %v494
    %v599 = vunpack.c.l.b16 %v495
    %v600 = vunpack.c.h.b16 %v495
    %v601 = vunpack.c.l.b16 %v496
    %v602 = vunpack.c.h.b16 %v496
    %v603 = vunpack.c.l.b16 %v497
    %v604 = vunpack.c.h.b16 %v497
    %v605 = vunpack.c.l.b16 %v498
    %v606 = vunpack.c.h.b16 %v498
    %v607 = vunpack.c.l.b16 %v499
    %v608 = vunpack.c.h.b16 %v499
    %v609 = vpack.c.b16 %v547, %v545
    %v610 = vpack.c.b16 %v548, %v546
    %v611 = vpack.c.b16 %v551, %v549
    %v612 = vpack.c.b16 %v552, %v550
    %v613 = vpack.c.b16 %v555, %v553
    %v614 = vpack.c.b16 %v556, %v554
    %v615 = vpack.c.b16 %v559, %v557
    %v616 = vpack.c.b16 %v560, %v558
    %v617 = vpack.c.b16 %v563, %v561
    %v618 = vpack.c.b16 %v564, %v562
    %v619 = vpack.c.b16 %v567, %v565
    %v620 = vpack.c.b16 %v568, %v566
    %v621 = vpack.c.b16 %v571, %v569
    %v622 = vpack.c.b16 %v572, %v570
    %v623 = vpack.c.b16 %v575, %v573
    %v624 = vpack.c.b16 %v576, %v574
    %v625 = vpack.c.b16 %v579, %v577
    %v626 = vpack.c.b16 %v580, %v578
    %v627 = vpack.c.b16 %v583, %v581
    %v628 = vpack.c.b16 %v584, %v582
    %v629 = vpack.c.b16 %v587, %v585
    %v630 = vpack.c.b16 %v588, %v586
    %v631 = vpack.c.b16 %v591, %v589
    %v632 = vpack.c.b16 %v592, %v590
    %v633 = vpack.c.b16 %v595, %v593
    %v634 = vpack.c.b16 %v596, %v594
    %v635 = vpack.c.b16 %v599, %v597
    %v636 = vpack.c.b16 %v600, %v598
    %v637 = vpack.c.b16 %v603, %v601
    %v638 = vpack.c.b16 %v604, %v602
    %v639 = vpack.c.b16 %v607, %v605
    %v640 = vpack.c.b16 %v608, %v606
    %673 = vmatprep.subr.bf16.mxu0 %v610
    %674 = vmatpush1.bf16.msra.mxu0 %v609
    %675 = vmatprep.subr.bf16.mxu0 %v612
    %676 = vmatpush1.bf16.msra.mxu0 %v611
    %677 = vmatprep.subr.bf16.mxu0 %v614
    %678 = vmatpush1.bf16.msra.mxu0 %v613
    %679 = vmatprep.subr.bf16.mxu0 %v616
    %680 = vmatpush1.bf16.msra.mxu0 %v615
    %681 = vmatprep.subr.bf16.mxu0 %v618
    %682 = vmatpush1.bf16.msra.mxu0 %v617
    %683 = vmatprep.subr.bf16.mxu0 %v620
    %684 = vmatpush1.bf16.msra.mxu0 %v619
    %685 = vmatprep.subr.bf16.mxu0 %v622
    %686 = vmatpush1.bf16.msra.mxu0 %v621
    %687 = vmatprep.subr.bf16.mxu0 %v624
    %688 = vmatpush1.bf16.msra.mxu0 %v623
    %689 = vmatprep.subr.bf16.mxu0 %v626
    %690 = vmatpush1.bf16.msra.mxu0 %v625
    %691 = vmatprep.subr.bf16.mxu0 %v628
    %692 = vmatpush1.bf16.msra.mxu0 %v627
    %693 = vmatprep.subr.bf16.mxu0 %v630
    %694 = vmatpush1.bf16.msra.mxu0 %v629
    %695 = vmatprep.subr.bf16.mxu0 %v632
    %696 = vmatpush1.bf16.msra.mxu0 %v631
    %697 = vmatprep.subr.bf16.mxu0 %v634
    %698 = vmatpush1.bf16.msra.mxu0 %v633
    %699 = vmatprep.subr.bf16.mxu0 %v636
    %700 = vmatpush1.bf16.msra.mxu0 %v635
    %701 = vmatprep.subr.bf16.mxu0 %v638
    %702 = vmatpush1.bf16.msra.mxu0 %v637
    %703 = vmatprep.subr.bf16.mxu0 %v640
    %704 = vmatpush1.bf16.msra.mxu0 %v639
    %705 = vmatprep.mubr.bf16.mxu0 %v466
    %706 = vmatmul.mubr.bf16.gmra.mrb[0].mxu0 %v465
    %v707 = vpop.f32.mrb[0].mxu0
    %v708 = vadd.f32 %v506, %v707
    %v709 = vpop.f32.mrb[0].mxu0
    %v710 = vadd.f32 %v510, %v709
    %v711 = vpop.f32.mrb[0].mxu0
    %v712 = vpop.f32.mrb[0].mxu0
    %713 = vdwg.mxu0
    %v714 = vmax.f32 %v708, 0.0
    %v715 = vmax.f32 %v710, 0.0
    %v716 = vpack.c.bf16 %v714, %v714
    %v717 = vpack.c.bf16 %v715, %v715
    %s718 = scalar_lea.vmem [#allocation5], 512
    %v719 = vld [vmem:[%s718] sm:$0xff]
    %v720 = vld [vmem:[%s718 + $0x8] sm:$0xff]
    %v721 = vld [vmem:[%s718 + $0x10] sm:$0xff]
    %v722 = vld [vmem:[%s718 + $0x18] sm:$0xff]
    %v723 = vld [vmem:[%s718 + $0x20] sm:$0xff]
    %v724 = vld [vmem:[%s718 + $0x28] sm:$0xff]
    %v725 = vld [vmem:[%s718 + $0x30] sm:$0xff]
    %v726 = vld [vmem:[%s718 + $0x38] sm:$0xff]
    %v727 = vld [vmem:[%s718 + $0x40] sm:$0xff]
    %v728 = vld [vmem:[%s718 + $0x48] sm:$0xff]
    %v729 = vld [vmem:[%s718 + $0x50] sm:$0xff]
    %v730 = vld [vmem:[%s718 + $0x58] sm:$0xff]
    %v731 = vld [vmem:[%s718 + $0x60] sm:$0xff]
    %v732 = vld [vmem:[%s718 + $0x68] sm:$0xff]
    %v733 = vld [vmem:[%s718 + $0x70] sm:$0xff]
    %v734 = vld [vmem:[%s718 + $0x78] sm:$0xff]
    %v735 = vld [vmem:[%s718 + $0x80] sm:$0xff]
    %v736 = vld [vmem:[%s718 + $0x88] sm:$0xff]
    %v737 = vld [vmem:[%s718 + $0x90] sm:$0xff]
    %v738 = vld [vmem:[%s718 + $0x98] sm:$0xff]
    %v739 = vld [vmem:[%s718 + $0xa0] sm:$0xff]
    %v740 = vld [vmem:[%s718 + $0xa8] sm:$0xff]
    %v741 = vld [vmem:[%s718 + $0xb0] sm:$0xff]
    %v742 = vld [vmem:[%s718 + $0xb8] sm:$0xff]
    %v743 = vld [vmem:[%s718 + $0xc0] sm:$0xff]
    %v744 = vld [vmem:[%s718 + $0xc8] sm:$0xff]
    %v745 = vld [vmem:[%s718 + $0xd0] sm:$0xff]
    %v746 = vld [vmem:[%s718 + $0xd8] sm:$0xff]
    %v747 = vld [vmem:[%s718 + $0xe0] sm:$0xff]
    %v748 = vld [vmem:[%s718 + $0xe8] sm:$0xff]
    %v749 = vld [vmem:[%s718 + $0xf0] sm:$0xff]
    %v750 = vld [vmem:[%s718 + $0xf8] sm:$0xff]
    %s751 = scalar_lea.vmem %s4, 3
    %v752 = vld [vmem:[%s751] ss:$8 sm:$0x3]
    %v754 = vlaneseq
    %v755 = vshrl.u32 %v754, 7
    %v756 = vsub.s32 0, %v755
    %v757 = vrot.slane %v752, %v756
    %v758 = vlaneseq
    %v759 = vshrl.u32 %v758, 7
    %v760 = vsub.s32 1, %v759
    %v761 = vrot.slane %v752, %v760
    %v796 = vunpack.c.l.b16 %v719
    %v797 = vunpack.c.h.b16 %v719
    %v798 = vunpack.c.l.b16 %v720
    %v799 = vunpack.c.h.b16 %v720
    %v800 = vunpack.c.l.b16 %v721
    %v801 = vunpack.c.h.b16 %v721
    %v802 = vunpack.c.l.b16 %v722
    %v803 = vunpack.c.h.b16 %v722
    %v804 = vunpack.c.l.b16 %v723
    %v805 = vunpack.c.h.b16 %v723
    %v806 = vunpack.c.l.b16 %v724
    %v807 = vunpack.c.h.b16 %v724
    %v808 = vunpack.c.l.b16 %v725
    %v809 = vunpack.c.h.b16 %v725
    %v810 = vunpack.c.l.b16 %v726
    %v811 = vunpack.c.h.b16 %v726
    %v812 = vunpack.c.l.b16 %v727
    %v813 = vunpack.c.h.b16 %v727
    %v814 = vunpack.c.l.b16 %v728
    %v815 = vunpack.c.h.b16 %v728
    %v816 = vunpack.c.l.b16 %v729
    %v817 = vunpack.c.h.b16 %v729
    %v818 = vunpack.c.l.b16 %v730
    %v819 = vunpack.c.h.b16 %v730
    %v820 = vunpack.c.l.b16 %v731
    %v821 = vunpack.c.h.b16 %v731
    %v822 = vunpack.c.l.b16 %v732
    %v823 = vunpack.c.h.b16 %v732
    %v824 = vunpack.c.l.b16 %v733
    %v825 = vunpack.c.h.b16 %v733
    %v826 = vunpack.c.l.b16 %v734
    %v827 = vunpack.c.h.b16 %v734
    %v828 = vunpack.c.l.b16 %v735
    %v829 = vunpack.c.h.b16 %v735
    %v830 = vunpack.c.l.b16 %v736
    %v831 = vunpack.c.h.b16 %v736
    %v832 = vunpack.c.l.b16 %v737
    %v833 = vunpack.c.h.b16 %v737
    %v834 = vunpack.c.l.b16 %v738
    %v835 = vunpack.c.h.b16 %v738
    %v836 = vunpack.c.l.b16 %v739
    %v837 = vunpack.c.h.b16 %v739
    %v838 = vunpack.c.l.b16 %v740
    %v839 = vunpack.c.h.b16 %v740
    %v840 = vunpack.c.l.b16 %v741
    %v841 = vunpack.c.h.b16 %v741
    %v842 = vunpack.c.l.b16 %v742
    %v843 = vunpack.c.h.b16 %v742
    %v844 = vunpack.c.l.b16 %v743
    %v845 = vunpack.c.h.b16 %v743
    %v846 = vunpack.c.l.b16 %v744
    %v847 = vunpack.c.h.b16 %v744
    %v848 = vunpack.c.l.b16 %v745
    %v849 = vunpack.c.h.b16 %v745
    %v850 = vunpack.c.l.b16 %v746
    %v851 = vunpack.c.h.b16 %v746
    %v852 = vunpack.c.l.b16 %v747
    %v853 = vunpack.c.h.b16 %v747
    %v854 = vunpack.c.l.b16 %v748
    %v855 = vunpack.c.h.b16 %v748
    %v856 = vunpack.c.l.b16 %v749
    %v857 = vunpack.c.h.b16 %v749
    %v858 = vunpack.c.l.b16 %v750
    %v859 = vunpack.c.h.b16 %v750
    %v860 = vpack.c.b16 %v798, %v796
    %v861 = vpack.c.b16 %v799, %v797
    %v862 = vpack.c.b16 %v802, %v800
    %v863 = vpack.c.b16 %v803, %v801
    %v864 = vpack.c.b16 %v806, %v804
    %v865 = vpack.c.b16 %v807, %v805
    %v866 = vpack.c.b16 %v810, %v808
    %v867 = vpack.c.b16 %v811, %v809
    %v868 = vpack.c.b16 %v814, %v812
    %v869 = vpack.c.b16 %v815, %v813
    %v870 = vpack.c.b16 %v818, %v816
    %v871 = vpack.c.b16 %v819, %v817
    %v872 = vpack.c.b16 %v822, %v820
    %v873 = vpack.c.b16 %v823, %v821
    %v874 = vpack.c.b16 %v826, %v824
    %v875 = vpack.c.b16 %v827, %v825
    %v876 = vpack.c.b16 %v830, %v828
    %v877 = vpack.c.b16 %v831, %v829
    %v878 = vpack.c.b16 %v834, %v832
    %v879 = vpack.c.b16 %v835, %v833
    %v880 = vpack.c.b16 %v838, %v836
    %v881 = vpack.c.b16 %v839, %v837
    %v882 = vpack.c.b16 %v842, %v840
    %v883 = vpack.c.b16 %v843, %v841
    %v884 = vpack.c.b16 %v846, %v844
    %v885 = vpack.c.b16 %v847, %v845
    %v886 = vpack.c.b16 %v850, %v848
    %v887 = vpack.c.b16 %v851, %v849
    %v888 = vpack.c.b16 %v854, %v852
    %v889 = vpack.c.b16 %v855, %v853
    %v890 = vpack.c.b16 %v858, %v856
    %v891 = vpack.c.b16 %v859, %v857
    %924 = vmatprep.subr.bf16.mxu0 %v861
    %925 = vmatpush1.bf16.msra.mxu0 %v860
    %926 = vmatprep.subr.bf16.mxu0 %v863
    %927 = vmatpush1.bf16.msra.mxu0 %v862
    %928 = vmatprep.subr.bf16.mxu0 %v865
    %929 = vmatpush1.bf16.msra.mxu0 %v864
    %930 = vmatprep.subr.bf16.mxu0 %v867
    %931 = vmatpush1.bf16.msra.mxu0 %v866
    %932 = vmatprep.subr.bf16.mxu0 %v869
    %933 = vmatpush1.bf16.msra.mxu0 %v868
    %934 = vmatprep.subr.bf16.mxu0 %v871
    %935 = vmatpush1.bf16.msra.mxu0 %v870
    %936 = vmatprep.subr.bf16.mxu0 %v873
    %937 = vmatpush1.bf16.msra.mxu0 %v872
    %938 = vmatprep.subr.bf16.mxu0 %v875
    %939 = vmatpush1.bf16.msra.mxu0 %v874
    %940 = vmatprep.subr.bf16.mxu0 %v877
    %941 = vmatpush1.bf16.msra.mxu0 %v876
    %942 = vmatprep.subr.bf16.mxu0 %v879
    %943 = vmatpush1.bf16.msra.mxu0 %v878
    %944 = vmatprep.subr.bf16.mxu0 %v881
    %945 = vmatpush1.bf16.msra.mxu0 %v880
    %946 = vmatprep.subr.bf16.mxu0 %v883
    %947 = vmatpush1.bf16.msra.mxu0 %v882
    %948 = vmatprep.subr.bf16.mxu0 %v885
    %949 = vmatpush1.bf16.msra.mxu0 %v884
    %950 = vmatprep.subr.bf16.mxu0 %v887
    %951 = vmatpush1.bf16.msra.mxu0 %v886
    %952 = vmatprep.subr.bf16.mxu0 %v889
    %953 = vmatpush1.bf16.msra.mxu0 %v888
    %954 = vmatprep.subr.bf16.mxu0 %v891
    %955 = vmatpush1.bf16.msra.mxu0 %v890
    %956 = vmatprep.mubr.bf16.mxu0 %v717
    %957 = vmatmul.mubr.bf16.gmra.mrb[0].mxu0 %v716
    %v958 = vpop.f32.mrb[0].mxu0
    %v959 = vadd.f32 %v757, %v958
    %v960 = vpop.f32.mrb[0].mxu0
    %v961 = vadd.f32 %v761, %v960
    %v962 = vpop.f32.mrb[0].mxu0
    %v963 = vpop.f32.mrb[0].mxu0
    %964 = vdwg.mxu0
    %v965 = vmax.f32 %v959, 0.0
    %v966 = vmax.f32 %v961, 0.0
    %v967 = vpack.c.bf16 %v965, %v965
    %v968 = vpack.c.bf16 %v966, %v966
    %v969 = vld [vmem:[#allocation7] sm:$0xf]
    %v970 = vld [vmem:[#allocation7 + $0x4] sm:$0xf]
    %v971 = vld [vmem:[#allocation7 + $0x8] sm:$0xf]
    %v972 = vld [vmem:[#allocation7 + $0xc] sm:$0xf]
    %v973 = vld [vmem:[#allocation7 + $0x10] sm:$0xf]
    %v974 = vld [vmem:[#allocation7 + $0x14] sm:$0xf]
    %v975 = vld [vmem:[#allocation7 + $0x18] sm:$0xf]
    %v976 = vld [vmem:[#allocation7 + $0x1c] sm:$0xf]
    %v977 = vld [vmem:[#allocation7 + $0x20] sm:$0xf]
    %v978 = vld [vmem:[#allocation7 + $0x24] sm:$0xf]
    %v979 = vld [vmem:[#allocation7 + $0x28] sm:$0xf]
    %v980 = vld [vmem:[#allocation7 + $0x2c] sm:$0xf]
    %v981 = vld [vmem:[#allocation7 + $0x30] sm:$0xf]
    %v982 = vld [vmem:[#allocation7 + $0x34] sm:$0xf]
    %v983 = vld [vmem:[#allocation7 + $0x38] sm:$0xf]
    %v984 = vld [vmem:[#allocation7 + $0x3c] sm:$0xf]
    %v985 = vld [vmem:[#allocation7 + $0x40] sm:$0xf]
    %v986 = vld [vmem:[#allocation7 + $0x44] sm:$0xf]
    %v987 = vld [vmem:[#allocation7 + $0x48] sm:$0xf]
    %v988 = vld [vmem:[#allocation7 + $0x4c] sm:$0xf]
    %v989 = vld [vmem:[#allocation7 + $0x50] sm:$0xf]
    %v990 = vld [vmem:[#allocation7 + $0x54] sm:$0xf]
    %v991 = vld [vmem:[#allocation7 + $0x58] sm:$0xf]
    %v992 = vld [vmem:[#allocation7 + $0x5c] sm:$0xf]
    %v993 = vld [vmem:[#allocation7 + $0x60] sm:$0xf]
    %v994 = vld [vmem:[#allocation7 + $0x64] sm:$0xf]
    %v995 = vld [vmem:[#allocation7 + $0x68] sm:$0xf]
    %v996 = vld [vmem:[#allocation7 + $0x6c] sm:$0xf]
    %v997 = vld [vmem:[#allocation7 + $0x70] sm:$0xf]
    %v998 = vld [vmem:[#allocation7 + $0x74] sm:$0xf]
    %v999 = vld [vmem:[#allocation7 + $0x78] sm:$0xf]
    %v1000 = vld [vmem:[#allocation7 + $0x7c] sm:$0xf]
    %v1001 = vld [vmem:[%s4 + $0x4] ss:$0 sm:$0xff]
    %v1034 = vunpack.c.l.b16 %v969
    %v1035 = vunpack.c.l.b16 %v970
    %v1036 = vunpack.c.l.b16 %v971
    %v1037 = vunpack.c.l.b16 %v972
    %v1038 = vunpack.c.l.b16 %v973
    %v1039 = vunpack.c.l.b16 %v974
    %v1040 = vunpack.c.l.b16 %v975
    %v1041 = vunpack.c.l.b16 %v976
    %v1042 = vunpack.c.l.b16 %v977
    %v1043 = vunpack.c.l.b16 %v978
    %v1044 = vunpack.c.l.b16 %v979
    %v1045 = vunpack.c.l.b16 %v980
    %v1046 = vunpack.c.l.b16 %v981
    %v1047 = vunpack.c.l.b16 %v982
    %v1048 = vunpack.c.l.b16 %v983
    %v1049 = vunpack.c.l.b16 %v984
    %v1050 = vunpack.c.l.b16 %v985
    %v1051 = vunpack.c.l.b16 %v986
    %v1052 = vunpack.c.l.b16 %v987
    %v1053 = vunpack.c.l.b16 %v988
    %v1054 = vunpack.c.l.b16 %v989
    %v1055 = vunpack.c.l.b16 %v990
    %v1056 = vunpack.c.l.b16 %v991
    %v1057 = vunpack.c.l.b16 %v992
    %v1058 = vunpack.c.l.b16 %v993
    %v1059 = vunpack.c.l.b16 %v994
    %v1060 = vunpack.c.l.b16 %v995
    %v1061 = vunpack.c.l.b16 %v996
    %v1062 = vunpack.c.l.b16 %v997
    %v1063 = vunpack.c.l.b16 %v998
    %v1064 = vunpack.c.l.b16 %v999
    %v1065 = vunpack.c.l.b16 %v1000
    %v1066 = vpack.c.b16 %v1035, %v1034
    %v1067 = vpack.c.b16 %v1037, %v1036
    %v1068 = vpack.c.b16 %v1039, %v1038
    %v1069 = vpack.c.b16 %v1041, %v1040
    %v1070 = vpack.c.b16 %v1043, %v1042
    %v1071 = vpack.c.b16 %v1045, %v1044
    %v1072 = vpack.c.b16 %v1047, %v1046
    %v1073 = vpack.c.b16 %v1049, %v1048
    %v1074 = vpack.c.b16 %v1051, %v1050
    %v1075 = vpack.c.b16 %v1053, %v1052
    %v1076 = vpack.c.b16 %v1055, %v1054
    %v1077 = vpack.c.b16 %v1057, %v1056
    %v1078 = vpack.c.b16 %v1059, %v1058
    %v1079 = vpack.c.b16 %v1061, %v1060
    %v1080 = vpack.c.b16 %v1063, %v1062
    %v1081 = vpack.c.b16 %v1065, %v1064
    %1098 = vmatprep.subr.bf16.mxu0 0
    %1099 = vmatpush1.bf16.msra.mxu0 %v1066
    %1100 = vmatprep.subr.bf16.mxu0 0
    %1101 = vmatpush1.bf16.msra.mxu0 %v1067
    %1102 = vmatprep.subr.bf16.mxu0 0
    %1103 = vmatpush1.bf16.msra.mxu0 %v1068
    %1104 = vmatprep.subr.bf16.mxu0 0
    %1105 = vmatpush1.bf16.msra.mxu0 %v1069
    %1106 = vmatprep.subr.bf16.mxu0 0
    %1107 = vmatpush1.bf16.msra.mxu0 %v1070
    %1108 = vmatprep.subr.bf16.mxu0 0
    %1109 = vmatpush1.bf16.msra.mxu0 %v1071
    %1110 = vmatprep.subr.bf16.mxu0 0
    %1111 = vmatpush1.bf16.msra.mxu0 %v1072
    %1112 = vmatprep.subr.bf16.mxu0 0
    %1113 = vmatpush1.bf16.msra.mxu0 %v1073
    %1114 = vmatprep.subr.bf16.mxu0 0
    %1115 = vmatpush1.bf16.msra.mxu0 %v1074
    %1116 = vmatprep.subr.bf16.mxu0 0
    %1117 = vmatpush1.bf16.msra.mxu0 %v1075
    %1118 = vmatprep.subr.bf16.mxu0 0
    %1119 = vmatpush1.bf16.msra.mxu0 %v1076
    %1120 = vmatprep.subr.bf16.mxu0 0
    %1121 = vmatpush1.bf16.msra.mxu0 %v1077
    %1122 = vmatprep.subr.bf16.mxu0 0
    %1123 = vmatpush1.bf16.msra.mxu0 %v1078
    %1124 = vmatprep.subr.bf16.mxu0 0
    %1125 = vmatpush1.bf16.msra.mxu0 %v1079
    %1126 = vmatprep.subr.bf16.mxu0 0
    %1127 = vmatpush1.bf16.msra.mxu0 %v1080
    %1128 = vmatprep.subr.bf16.mxu0 0
    %1129 = vmatpush1.bf16.msra.mxu0 %v1081
    %1130 = vmatprep.mubr.bf16.mxu0 %v968
    %1131 = vmatmul.mubr.bf16.gmra.mrb[0].mxu0 %v967
    %v1132 = vpop.f32.mrb[0].mxu0
    %v1133 = vadd.f32 %v1001, %v1132
    %v1134 = vpop.f32.mrb[0].mxu0
    %v1135 = vpop.f32.mrb[0].mxu0
    %v1136 = vpop.f32.mrb[0].mxu0
    %1137 = vdwg.mxu0
    %1138 = vst [vmem:[#allocation8] sm:$0xff] %v1133
    // Predicated region
    $region34: #{_mlp_forward_padded.1} parent=1 // pred_check
      _
    $region35: #{_mlp_forward_padded.1} parent=1 // pred_check_branch
      %1140 = sbr.rel (0) target = $region37
    $region36: #{_mlp_forward_padded.1} parent=1 // pred_region
      %s1142 = ssub.s32 128, 128
      %1143 = vsyncadd [#allocation4], %s1142
      %s1145 = sshll.u32 [#allocation8], 4
      %s1146 = int_to_ptr.vmem [resolvable:$true] %s1145
      %1148 = dma.vmem_to_hbm [thread:$0]  %s1146, 128, %s5, [#allocation4]
    $region37: #{_mlp_forward_padded.1} parent=1 // pred_fallthru
      _
    // Predicated region
    $region38: #{_mlp_forward_padded.1} parent=1 // pred_check
      _
    $region39: #{_mlp_forward_padded.1} parent=1 // pred_check_branch
      %1150 = sbr.rel (0) target = $region41
    $region40: #{_mlp_forward_padded.1} parent=1 // pred_region
      %1151 = dma.done [#allocation4], 128
    $region41: #{_mlp_forward_padded.1} parent=1 // pred_fallthru
      _
    %1152 = vsyncpa [#allocation3], 1
    %1153 = vsyncpa [#allocation6], 1
    %1154 = vsyncpa [#allocation4], 1

</llo_original>
